<compile_context>
chip_gen: v7x
topology: tpu7x:2x2x1
jax: 0.10.0
libtpu: 0.0.40
codegen_flags: <defaults>
</compile_context>

<pallas_src>
import functools

import numpy as np

import jax
import jax.numpy as jnp
from jax import lax
from jax.experimental import pallas as pl
from jax.experimental.pallas import tpu as pltpu

MARGIN = 0.875
_LANES = 128
_SUBLANES = 8


def _delta_elem(a, p, n):
    # Elementwise integrand of dp - dn:
    #   (a-p)^2 - (a-n)^2 = (n - p) * ((a - p) + (a - n))
    # -> a single reduction instead of two, and half the subtracts.
    return (n - p) * ((a - p) + (a - n))


def _vmem_budget():
    """(max bytes per input block, scoped VMEM limit), tuned per chip."""
    try:
        cap = int(getattr(pltpu.get_tpu_info(), "vmem_capacity_bytes", 0))
    except Exception:
        cap = 0
    if cap >= 96 * 1024 * 1024:
        # v5e / v6e: 128 MiB physical VMEM -> slightly larger tiles are free.
        return 4 * 1024 * 1024, 48 * 1024 * 1024
    # v7x (64 MiB physical, 32 MiB scoped default) and unknown chips.
    return 2 * 1024 * 1024, 32 * 1024 * 1024


def _choose_block_rows(total_rows, row_bytes, max_block_bytes, multiple):
    """Row tile: multiple of `multiple`, one block under max_block_bytes, and
    small enough that the grid has ~>=4 steps when the input allows (DMA /
    compute overlap + dual-TensorCore sharding of the parallel axis)."""
    cap = (max_block_bytes // max(1, row_bytes)) // multiple * multiple
    cap = max(multiple, cap)
    target = max(multiple, (max(total_rows, 1) // 4) // multiple * multiple)
    return min(cap, target)


def _packed_kernel(a_ref, p_ref, n_ref, seg_ref, o_ref, *, feat, margin):
    # Lane-packed path: blocks are (tb, 128) where each 128-lane row holds
    # 128 // feat consecutive original rows (feat contiguous lanes each).
    a = a_ref[...].astype(jnp.float32)
    p = p_ref[...].astype(jnp.float32)
    n = n_ref[...].astype(jnp.float32)
    delta = _delta_elem(a, p, n)                                  # (tb, 128)

    # Per-original-row (segment) sums on the MXU.  seg_ref is a constant 0/1
    # matrix with one hot column per segment (its block index is always
    # (0, 0), so it is DMA'd once and stays resident in VMEM).  Column j holds
    # the segment sum iff j is the first lane of its segment and is exactly 0
    # otherwise.
    y = jnp.dot(delta, seg_ref[...], preferred_element_type=jnp.float32)

    # One-vreg bias: +margin on segment-head lanes, -1e30 elsewhere so relu
    # zeroes the dead lanes (y is exactly 0 there).  feat is a power of two,
    # so the % lowers to a bitwise AND.
    lane = lax.broadcasted_iota(jnp.int32, (1, _LANES), 1)
    bias = jnp.where(lane % feat == 0, jnp.float32(margin), jnp.float32(-1e30))

    hinge = jnp.maximum(y + bias, 0.0)                            # (tb, 128)
    tb = hinge.shape[0]
    # Sublane-only fold: lane-parallel VALU adds across vregs; the JAX-side
    # jnp.sum over the (num_blocks, 8, 128) partials finishes the reduction.
    o_ref[0] = hinge.reshape(tb // _SUBLANES, _SUBLANES, _LANES).sum(axis=0)


def _rowwise_kernel(a_ref, p_ref, n_ref, o_ref, *, margin):
    # Generic path: blocks are (tb, D); per-row lane reduction is unavoidable.
    a = a_ref[...].astype(jnp.float32)
    p = p_ref[...].astype(jnp.float32)
    n = n_ref[...].astype(jnp.float32)
    delta = jnp.sum(_delta_elem(a, p, n), axis=1, keepdims=True)  # (tb, 1)
    hinge = jnp.maximum(delta + margin, 0.0)                      # (tb, 1)
    tb = hinge.shape[0]
    o_ref[0] = hinge.reshape(tb // _SUBLANES, _SUBLANES, 1).sum(axis=0)


def _run_packed(a2, p2, n2, seg, block_rows, *, feat, margin, vmem_limit,
                flops, bytes_accessed):
    rows = a2.shape[0]
    num_blocks = rows // block_rows
    in_spec = pl.BlockSpec((block_rows, _LANES), lambda i: (i, 0))
    seg_spec = pl.BlockSpec((_LANES, _LANES), lambda i: (0, 0))   # resident
    return pl.pallas_call(
        functools.partial(_packed_kernel, feat=feat, margin=margin),
        out_shape=jax.ShapeDtypeStruct((num_blocks, _SUBLANES, _LANES),
                                       jnp.float32),
        grid=(num_blocks,),
        in_specs=[in_spec, in_spec, in_spec, seg_spec],
        out_specs=pl.BlockSpec((1, _SUBLANES, _LANES), lambda i: (i, 0, 0)),
        compiler_params=pltpu.CompilerParams(
            # Independent per-block partials -> truly parallel grid axis.
            dimension_semantics=("parallel",),
            vmem_limit_bytes=vmem_limit),
        cost_estimate=pl.CostEstimate(
            flops=flops, transcendentals=0, bytes_accessed=bytes_accessed),
    )(a2, p2, n2, seg)


def _run_rowwise(a2, p2, n2, block_rows, *, margin, vmem_limit, flops,
                 bytes_accessed):
    rows, width = a2.shape
    num_blocks = rows // block_rows
    in_spec = pl.BlockSpec((block_rows, width), lambda i: (i, 0))
    return pl.pallas_call(
        functools.partial(_rowwise_kernel, margin=margin),
        out_shape=jax.ShapeDtypeStruct((num_blocks, _SUBLANES, 1),
                                       jnp.float32),
        grid=(num_blocks,),
        in_specs=[in_spec, in_spec, in_spec],
        out_specs=pl.BlockSpec((1, _SUBLANES, 1), lambda i: (i, 0, 0)),
        compiler_params=pltpu.CompilerParams(
            dimension_semantics=("parallel",),
            vmem_limit_bytes=vmem_limit),
        cost_estimate=pl.CostEstimate(
            flops=flops, transcendentals=0, bytes_accessed=bytes_accessed),
    )(a2, p2, n2)


def triplet_loss(anchor, positive, negative, margin=MARGIN,
                 small_input_elems=2048):
    B, D = anchor.shape
    assert positive.shape == (B, D) and negative.shape == (B, D)
    margin = float(margin)

    # Tiny inputs: kernel launch + ~0.35 us/step overhead dominates; XLA's
    # fused elementwise + reduce is faster.
    if B * D <= small_input_elems:
        a32 = anchor.astype(jnp.float32)
        dp = jnp.sum((a32 - positive.astype(jnp.float32)) ** 2, axis=1)
        dn = jnp.sum((a32 - negative.astype(jnp.float32)) ** 2, axis=1)
        return jnp.mean(jnp.maximum(dp - dn + margin, 0.0))

    itemsize = jnp.dtype(anchor.dtype).itemsize
    sub_mult = _SUBLANES * max(1, 4 // itemsize)  # dtype-aware sublane tile
    max_block_bytes, vmem_limit = _vmem_budget()

    if D < _LANES and _LANES % D == 0:
        # Lane-dense packing: each 128-lane row holds k = 128 // D whole
        # original rows (free, contiguous row-major reshape; rows zero-padded
        # so every block is full -- padded rows are corrected exactly below).
        k = _LANES // D
        rows_needed = pl.cdiv(B, k)
        block_rows = _choose_block_rows(rows_needed, _LANES * itemsize,
                                        max_block_bytes, sub_mult)
        num_blocks = pl.cdiv(rows_needed, block_rows)
        rows_pad = num_blocks * block_rows
        b_pad = rows_pad * k

        def prep(x):
            if b_pad != B:
                x = jnp.pad(x, ((0, b_pad - B), (0, 0)))
            return x.reshape(rows_pad, _LANES)

        seg = np.zeros((_LANES, _LANES), np.float32)
        seg[np.arange(_LANES), (np.arange(_LANES) // D) * D] = 1.0

        flops = 6 * b_pad * D + 2 * rows_pad * _LANES * _LANES
        bytes_acc = (3 * rows_pad * _LANES * itemsize
                     + _LANES * _LANES * 4
                     + num_blocks * _SUBLANES * _LANES * 4)
        parts = _run_packed(prep(anchor), prep(positive), prep(negative),
                            jnp.asarray(seg), block_rows, feat=D,
                            margin=margin, vmem_limit=vmem_limit,
                            flops=flops, bytes_accessed=bytes_acc)
    else:
        # Generic row-wise path (D >= 128 or D does not divide 128).
        block_rows = _choose_block_rows(B, D * itemsize, max_block_bytes,
                                        sub_mult)
        num_blocks = pl.cdiv(B, block_rows)
        b_pad = num_blocks * block_rows

        def prep(x):
            if b_pad != B:
                x = jnp.pad(x, ((0, b_pad - B), (0, 0)))
            return x

        flops = 7 * b_pad * D
        bytes_acc = 3 * b_pad * D * itemsize + num_blocks * _SUBLANES * 4
        parts = _run_rowwise(prep(anchor), prep(positive), prep(negative),
                             block_rows, margin=margin,
                             vmem_limit=vmem_limit, flops=flops,
                             bytes_accessed=bytes_acc)

    # Each zero-padded row contributes exactly relu(0 - 0 + margin); remove it.
    total = jnp.sum(parts) - jnp.float32((b_pad - B) * max(margin, 0.0))
    return total / jnp.float32(B)


if __name__ == "__main__":
    key = jax.random.PRNGKey(0)

    def ref_loss(a, p, n, margin=MARGIN):
        dp = jnp.sum((a - p) ** 2, axis=1)
        dn = jnp.sum((a - n) ** 2, axis=1)
        return jnp.mean(jnp.maximum(dp - dn + margin, 0.0))

    cases = [
        (256, 32),   # packed path (feat=32, 4 rows/vreg-row), no padding
        (200, 32),   # packed path with zero-padded tail rows
        (64, 192),   # generic row-wise path (D does not divide 128)
        (16, 32),    # tiny: plain-JAX fast path
    ]
    main_loss = None
    for B, D in cases:
        key, ka, kp, kn = jax.random.split(key, 4)
        anchor = jax.random.normal(ka, (B, D), dtype=jnp.float32)
        positive = jax.random.normal(kp, (B, D), dtype=jnp.float32)
        negative = jax.random.normal(kn, (B, D), dtype=jnp.float32)

        loss = jax.block_until_ready(triplet_loss(anchor, positive, negative))
        ref = ref_loss(anchor, positive, negative)
        # tolerance allows a few f32 ulps from the algebraically-fused reduce
        assert jnp.allclose(loss, ref, rtol=1e-4, atol=1e-5), (B, D, loss, ref)
        if main_loss is None:
            main_loss = loss

    print("KERNEL_OK")
</pallas_src>

<mosaic_0001>
module attributes {stable_mosaic.version = 11 : i64} {
  func.func @_packed_kernel(%arg0: i32, %arg1: memref<16x128xf32, #tpu.memory_space<vmem>>, %arg2: memref<16x128xf32, #tpu.memory_space<vmem>>, %arg3: memref<16x128xf32, #tpu.memory_space<vmem>>, %arg4: memref<128x128xf32, #tpu.memory_space<vmem>>, %arg5: memref<1x8x128xf32, #tpu.memory_space<vmem>>) attributes {dimension_semantics = [#tpu.dimension_semantics<parallel>], iteration_bounds = array<i64: 4>, scalar_prefetch = 0 : i64, scratch_operands = 0 : i64, tpu.core_type = #tpu.core_type<tc>, window_params = [{transform_indices = @transform_0, window_bounds = array<i64: 16, 128>}, {transform_indices = @transform_1, window_bounds = array<i64: 16, 128>}, {transform_indices = @transform_2, window_bounds = array<i64: 16, 128>}, {pipeline_mode = #tpu.pipeline_mode<synchronous>, transform_indices = @transform_3, window_bounds = array<i64: 128, 128>}, {transform_indices = @transform_4, window_bounds = array<i64: 1, 8, 128>}]} {
    %c0 = arith.constant 0 : index
    %c0_0 = arith.constant 0 : index
    %0 = vector.load %arg1[%c0, %c0_0] : memref<16x128xf32, #tpu.memory_space<vmem>>, vector<16x128xf32>
    %c0_1 = arith.constant 0 : index
    %c0_2 = arith.constant 0 : index
    %1 = vector.load %arg2[%c0_1, %c0_2] : memref<16x128xf32, #tpu.memory_space<vmem>>, vector<16x128xf32>
    %c0_3 = arith.constant 0 : index
    %c0_4 = arith.constant 0 : index
    %2 = vector.load %arg3[%c0_3, %c0_4] : memref<16x128xf32, #tpu.memory_space<vmem>>, vector<16x128xf32>
    %3 = arith.subf %2, %1 : vector<16x128xf32>
    %4 = arith.subf %0, %1 : vector<16x128xf32>
    %5 = arith.subf %0, %2 : vector<16x128xf32>
    %6 = arith.addf %4, %5 : vector<16x128xf32>
    %7 = arith.mulf %3, %6 : vector<16x128xf32>
    %c0_5 = arith.constant 0 : index
    %c0_6 = arith.constant 0 : index
    %8 = vector.load %arg4[%c0_5, %c0_6] : memref<128x128xf32, #tpu.memory_space<vmem>>, vector<128x128xf32>
    %cst = arith.constant dense<0.000000e+00> : vector<16x128xf32>
    %9 = tpu.matmul %7, %8, %cst {dimension_numbers = #tpu.dot_dimension_numbers<[1], [0], [0], [1], [0, 0, 1, 1], [], []>} : vector<16x128xf32>, vector<128x128xf32>, vector<16x128xf32> -> vector<16x128xf32>
    %10 = tpu.iota {dimensions = array<i32: 1>} : vector<1x128xi32>
    %c32_i32 = arith.constant 32 : i32
    %c0_i32 = arith.constant 0 : i32
    %11 = arith.cmpi eq, %c32_i32, %c0_i32 : i32
    %c1_i32 = arith.constant 1 : i32
    %12 = arith.select %11, %c1_i32, %c32_i32 : i32
    %13 = vector.broadcast %12 : i32 to vector<1x128xi32>
    %14 = arith.remsi %10, %13 : vector<1x128xi32>
    %c0_i32_7 = arith.constant 0 : i32
    %15 = vector.broadcast %c0_i32_7 : i32 to vector<1x128xi32>
    %16 = arith.cmpi ne, %14, %15 : vector<1x128xi32>
    %c0_i32_8 = arith.constant 0 : i32
    %17 = vector.broadcast %c0_i32_8 : i32 to vector<1x128xi32>
    %18 = arith.cmpi slt, %14, %17 : vector<1x128xi32>
    %c0_i32_9 = arith.constant 0 : i32
    %19 = arith.cmpi slt, %12, %c0_i32_9 : i32
    %20 = vector.broadcast %19 : i1 to vector<1x128xi1>
    %21 = vector.broadcast %20 : vector<1x128xi1> to vector<1x128xi1>
    %22 = arith.xori %18, %21 : vector<1x128xi1>
    %23 = arith.andi %22, %16 : vector<1x128xi1>
    %24 = vector.broadcast %12 : i32 to vector<1x128xi32>
    %25 = arith.addi %14, %24 : vector<1x128xi32>
    %26 = arith.select %23, %25, %14 : vector<1x128xi1>, vector<1x128xi32>
    %c0_i32_10 = arith.constant 0 : i32
    %27 = vector.broadcast %c0_i32_10 : i32 to vector<1x128xi32>
    %28 = arith.cmpi eq, %26, %27 : vector<1x128xi32>
    %cst_11 = arith.constant 8.750000e-01 : f32
    %cst_12 = arith.constant -1.000000e+30 : f32
    %29 = vector.broadcast %cst_11 : f32 to vector<1x128xf32>
    %30 = vector.broadcast %cst_12 : f32 to vector<1x128xf32>
    %31 = arith.select %28, %29, %30 : vector<1x128xi1>, vector<1x128xf32>
    %32 = vector.broadcast %31 : vector<1x128xf32> to vector<16x128xf32>
    %33 = arith.addf %9, %32 : vector<16x128xf32>
    %cst_13 = arith.constant 0.000000e+00 : f32
    %34 = vector.broadcast %cst_13 : f32 to vector<16x128xf32>
    %35 = arith.maximumf %33, %34 : vector<16x128xf32>
    %36 = vector.shape_cast %35 : vector<16x128xf32> to vector<2x8x128xf32>
    %cst_14 = arith.constant dense<0.000000e+00> : vector<8x128xf32>
    %37 = vector.multi_reduction <add>, %36, %cst_14 [0] : vector<2x8x128xf32> to vector<8x128xf32>
    %c0_15 = arith.constant 0 : index
    %c0_16 = arith.constant 0 : index
    %c0_17 = arith.constant 0 : index
    %38 = vector.load %arg5[%c0_15, %c0_16, %c0_17] : memref<1x8x128xf32, #tpu.memory_space<vmem>>, vector<1x8x128xf32>
    %39 = vector.shape_cast %38 : vector<1x8x128xf32> to vector<8x128xf32>
    %40 = vector.shape_cast %37 : vector<8x128xf32> to vector<1x8x128xf32>
    tpu.vector_store %arg5[%c0_15, %c0_16, %c0_17], %40 {strides = array<i32>} : memref<1x8x128xf32, #tpu.memory_space<vmem>>, vector<1x8x128xf32>,
    return
  }
  func.func @transform_0(%arg0: i32) -> (i32, i32) {
    %c0_i32 = arith.constant 0 : i32
    %c0_i32_0 = arith.constant 0 : i32
    return %arg0, %c0_i32 : i32, i32
  }
  func.func @transform_1(%arg0: i32) -> (i32, i32) {
    %c0_i32 = arith.constant 0 : i32
    %c0_i32_0 = arith.constant 0 : i32
    return %arg0, %c0_i32 : i32, i32
  }
  func.func @transform_2(%arg0: i32) -> (i32, i32) {
    %c0_i32 = arith.constant 0 : i32
    %c0_i32_0 = arith.constant 0 : i32
    return %arg0, %c0_i32 : i32, i32
  }
  func.func @transform_3(%arg0: i32) -> (i32, i32) {
    %c0_i32 = arith.constant 0 : i32
    %c0_i32_0 = arith.constant 0 : i32
    %c0_i32_1 = arith.constant 0 : i32
    return %c0_i32, %c0_i32_0 : i32, i32
  }
  func.func @transform_4(%arg0: i32) -> (i32, i32, i32) {
    %c0_i32 = arith.constant 0 : i32
    %c0_i32_0 = arith.constant 0 : i32
    %c0_i32_1 = arith.constant 0 : i32
    return %arg0, %c0_i32, %c0_i32_0 : i32, i32, i32
  }
}

</mosaic_0001>

<llo_original>
// kernel: tpu_custom_call.1
$region0: #{tpu_custom_call.1}
  #allocation0 [shape = 'u32[]', space=smem, size = 0x4, offset = 0x4, fixed_abs, tag = 'smem constant byte address 0x4 - core index']
  #allocation1 [shape = 'u32[144,128]{1,0:T(1,128)}', space=vmem, size = 0x12000, scoped, tag = 'internal scratch']
  %s0 = inlined_call_operand.hbm [shape: f32[64,128], index: 0, kind: input, shape index: {}]
  %s1 = inlined_call_operand.hbm [shape: f32[64,128], index: 1, kind: input, shape index: {}]
  %s2 = inlined_call_operand.hbm [shape: f32[64,128], index: 2, kind: input, shape index: {}]
  %s3 = inlined_call_operand.hbm [shape: f32[128,128], index: 3, kind: input, shape index: {}]
  %s4 = inlined_call_operand.hbm [shape: f32[4,8,128], index: 4, kind: output, shape index: {}]
  %s5 = sld [smem:[#allocation0]]
  $region65: #{tpu_custom_call.1} parent=0
    _
  %s7 = ssub.s32 1, %s5
  %s8 = scalar_select 0, %s7, %s5
  $region1: #{tpu_custom_call.1} parent=0
    #allocation2 [shape = 'u8[16384]{0}', space=vmem, size = 0x4000, scoped, tag = 'input window, operand 0']
    #allocation3 [shape = 's32[2]{0}', space=sflag, size = 0x8, scoped, tag = 'scoped memory for tpu_custom_call.1']
    #allocation4 [shape = 's32[2]{0}', space=sflag, size = 0x8, scoped, tag = 'scoped memory for tpu_custom_call.1']
    #allocation5 [shape = 'u8[16384]{0}', space=vmem, size = 0x4000, scoped, tag = 'input window, operand 1']
    #allocation6 [shape = 's32[2]{0}', space=sflag, size = 0x8, scoped, tag = 'scoped memory for tpu_custom_call.1']
    #allocation7 [shape = 'u8[16384]{0}', space=vmem, size = 0x4000, scoped, tag = 'input window, operand 2']
    #allocation8 [shape = 'u8[65536]{0}', space=vmem, size = 0x10000, scoped, tag = 'input window, operand 3, single buffered']
    #allocation9 [shape = 's32[1]{0}', space=sflag, size = 0x4, scoped, tag = 'scoped memory for tpu_custom_call.1']
    #allocation10 [shape = 'u8[8192]{0}', space=vmem, size = 0x2000, scoped, tag = 'output window, operand 0']
    %9 = vsyncpa [#allocation3], 0
    %s10 = scalar_lea.sflag [#allocation3], 1
    %11 = vsyncpa %s10, 0
    %12 = vsyncpa [#allocation6], 0
    %s13 = scalar_lea.sflag [#allocation6], 1
    %14 = vsyncpa %s13, 0
    %15 = vsyncpa [#allocation9], 0
    %16 = vsyncpa [#allocation4], 0
    %s17 = scalar_lea.sflag [#allocation4], 1
    %18 = vsyncpa %s17, 0
    loop: start=0, step=1, limit=6
    $region2: #{tpu_custom_call.1} parent=1 // loop_pre_header
      _
    $region3: #{tpu_custom_call.1} parent=1 // loop_header
      %s20 = sphi 0, %s24
      %p21 = scmp.ge.s32.totalorder %s20, 6
      %s30 = sphi 0, %s32
      %s33 = sphi 0, %s30
      %s34 = sphi 0, %s33
      %s50 = sphi 0, %s34
      %s56 = sphi 0, %s58
      %s59 = sphi 0, %s56
      %s60 = sphi 0, %s59
      %s76 = sphi 0, %s60
      %s82 = sphi 0, %s84
      %s85 = sphi 0, %s82
      %s86 = sphi 0, %s85
      %s102 = sphi 0, %s86
      %s106 = sphi 0, %s106
      %s108 = sphi 0, %s106
      %s109 = sphi 0, %s108
      %s123 = sphi 0, %s109
      %s129 = sphi 0, %s131
      %s132 = sphi 0, %s129
      %s133 = sphi 0, %s132
      %s149 = sphi 0, %s133
    $region4: #{tpu_custom_call.1} parent=1 // loop_header_branch
      %23 = sbr.rel (%p21) target = $region8
    $region5: #{tpu_custom_call.1} parent=1 // loop_body
      %s25 = ssub.s32 %s20, 1
      %s26 = ssub.s32 %s20, 2
      %s27 = sadd.s32 %s20, 1
      %s28 = ssub.s32 %s20, %s27
      %p29 = scmp.eq.s32.totalorder %s28, 0
      %s31 = sadd.s32 %s30, 1
      %s32 = scalar_select %p29, %s30, %s31
      %p35 = pneg %p29
      %p36 = scmp.eq.s32.totalorder %s20, 3
      %p37 = por %p35, %p36
      %p38 = scmp.ne.s32.totalorder %s30, %s33
      %p39 = scmp.eq.s32.totalorder %s20, 0
      %p40 = por %p38, %p39
      %p41 = scmp.ne.s32.totalorder %s30, %s33
      %p42 = scmp.eq.s32.totalorder %s25, 3
      %p43 = por %p41, %p42
      %p44 = scmp.ne.s32.totalorder %s33, %s34
      %p45 = scmp.eq.s32.totalorder %s25, 0
      %p46 = por %p44, %p45
      %p47 = scmp.ne.s32.totalorder %s33, %s34
      %p48 = scmp.eq.s32.totalorder %s26, 3
      %p49 = por %p47, %p48
      %p51 = scmp.ne.s32.totalorder %s34, %s50
      %p52 = scmp.eq.s32.totalorder %s26, 0
      %p53 = por %p51, %p52
      %s54 = ssub.s32 %s20, %s27
      %p55 = scmp.eq.s32.totalorder %s54, 0
      %s57 = sadd.s32 %s56, 1
      %s58 = scalar_select %p55, %s56, %s57
      %p61 = pneg %p55
      %p62 = scmp.eq.s32.totalorder %s20, 3
      %p63 = por %p61, %p62
      %p64 = scmp.ne.s32.totalorder %s56, %s59
      %p65 = scmp.eq.s32.totalorder %s20, 0
      %p66 = por %p64, %p65
      %p67 = scmp.ne.s32.totalorder %s56, %s59
      %p68 = scmp.eq.s32.totalorder %s25, 3
      %p69 = por %p67, %p68
      %p70 = scmp.ne.s32.totalorder %s59, %s60
      %p71 = scmp.eq.s32.totalorder %s25, 0
      %p72 = por %p70, %p71
      %p73 = scmp.ne.s32.totalorder %s59, %s60
      %p74 = scmp.eq.s32.totalorder %s26, 3
      %p75 = por %p73, %p74
      %p77 = scmp.ne.s32.totalorder %s60, %s76
      %p78 = scmp.eq.s32.totalorder %s26, 0
      %p79 = por %p77, %p78
      %s80 = ssub.s32 %s20, %s27
      %p81 = scmp.eq.s32.totalorder %s80, 0
      %s83 = sadd.s32 %s82, 1
      %s84 = scalar_select %p81, %s82, %s83
      %p87 = pneg %p81
      %p88 = scmp.eq.s32.totalorder %s20, 3
      %p89 = por %p87, %p88
      %p90 = scmp.ne.s32.totalorder %s82, %s85
      %p91 = scmp.eq.s32.totalorder %s20, 0
      %p92 = por %p90, %p91
      %p93 = scmp.ne.s32.totalorder %s82, %s85
      %p94 = scmp.eq.s32.totalorder %s25, 3
      %p95 = por %p93, %p94
      %p96 = scmp.ne.s32.totalorder %s85, %s86
      %p97 = scmp.eq.s32.totalorder %s25, 0
      %p98 = por %p96, %p97
      %p99 = scmp.ne.s32.totalorder %s85, %s86
      %p100 = scmp.eq.s32.totalorder %s26, 3
      %p101 = por %p99, %p100
      %p103 = scmp.ne.s32.totalorder %s86, %s102
      %p104 = scmp.eq.s32.totalorder %s26, 0
      %p105 = por %p103, %p104
      %s107 = sadd.s32 %s106, 1
      %p110 = scmp.eq.s32.totalorder %s20, 3
      %p111 = scmp.ne.s32.totalorder %s106, %s108
      %p112 = scmp.eq.s32.totalorder %s20, 0
      %p113 = por %p111, %p112
      %p114 = scmp.ne.s32.totalorder %s106, %s108
      %p115 = scmp.eq.s32.totalorder %s25, 3
      %p116 = por %p114, %p115
      %p117 = scmp.ne.s32.totalorder %s108, %s109
      %p118 = scmp.eq.s32.totalorder %s25, 0
      %p119 = por %p117, %p118
      %p120 = scmp.ne.s32.totalorder %s108, %s109
      %p121 = scmp.eq.s32.totalorder %s26, 3
      %p122 = por %p120, %p121
      %p124 = scmp.ne.s32.totalorder %s109, %s123
      %p125 = scmp.eq.s32.totalorder %s26, 0
      %p126 = por %p124, %p125
      %s127 = ssub.s32 %s20, %s27
      %p128 = scmp.eq.s32.totalorder %s127, 0
      %s130 = sadd.s32 %s129, 1
      %s131 = scalar_select %p128, %s129, %s130
      %p134 = pneg %p128
      %p135 = scmp.eq.s32.totalorder %s20, 3
      %p136 = por %p134, %p135
      %p137 = scmp.ne.s32.totalorder %s129, %s132
      %p138 = scmp.eq.s32.totalorder %s20, 0
      %p139 = por %p137, %p138
      %p140 = scmp.ne.s32.totalorder %s129, %s132
      %p141 = scmp.eq.s32.totalorder %s25, 3
      %p142 = por %p140, %p141
      %p143 = scmp.ne.s32.totalorder %s132, %s133
      %p144 = scmp.eq.s32.totalorder %s25, 0
      %p145 = por %p143, %p144
      %p146 = scmp.ne.s32.totalorder %s132, %s133
      %p147 = scmp.eq.s32.totalorder %s26, 3
      %p148 = por %p146, %p147
      %p150 = scmp.ne.s32.totalorder %s133, %s149
      %p151 = scmp.eq.s32.totalorder %s26, 0
      %p152 = por %p150, %p151
      %p153 = scmp.le.s32.totalorder 1, %s20
      %p154 = scmp.lt.s32.totalorder %s20, 5
      %p155 = pnand %p153, %p154
      %p156 = pneg %p155
      // Predicated region
      $region9: #{tpu_custom_call.1} parent=5 // pred_check
        _
      $region10: #{tpu_custom_call.1} parent=5 // pred_check_branch
        %158 = sbr.rel (%p155) target = $region12
      $region11: #{tpu_custom_call.1} parent=5 // pred_region
        %s159 = ssub.s32 %s20, 1
        // Predicated region
        $region13: #{tpu_custom_call.1} parent=11 // pred_check
          %p160 = pneg %p119
        $region14: #{tpu_custom_call.1} parent=11 // pred_check_branch
          %162 = sbr.rel (%p160) target = $region16
        $region15: #{tpu_custom_call.1} parent=11 // pred_region
          %s164 = ssub.s32 2048, 2048
          %165 = vsyncadd [#allocation9], %s164
          %s166 = sshll.u32 [#allocation8], 4
          %s167 = int_to_ptr.vmem [resolvable:$true] %s166
          %172 = dma.hbm_to_vmem [thread:$0]  %s3, 2048, %s167, [#allocation9], 128, 128, 8
        $region16: #{tpu_custom_call.1} parent=11 // pred_fallthru
          _
      $region12: #{tpu_custom_call.1} parent=5 // pred_fallthru
        _
      %p173 = scmp.lt.s32.totalorder %s20, 4
      // Predicated region
      $region17: #{tpu_custom_call.1} parent=5 // pred_check
        %p174 = pneg %p173
      $region18: #{tpu_custom_call.1} parent=5 // pred_check_branch
        %176 = sbr.rel (%p174) target = $region20
      $region19: #{tpu_custom_call.1} parent=5 // pred_region
        // Predicated region
        $region21: #{tpu_custom_call.1} parent=19 // pred_check
          %p177 = pneg %p40
        $region22: #{tpu_custom_call.1} parent=19 // pred_check_branch
          %179 = sbr.rel (%p177) target = $region24
        $region23: #{tpu_custom_call.1} parent=19 // pred_region
          %s180 = sand.u32 %s30, 1
          %s181 = scalar_lea.sflag [#allocation3], %s180
          %s182 = sand.u32 %s30, 1
          %s183 = smul.addr %s182, 16
          %s184 = scalar_lea.vmem [#allocation2], %s183
          %s185 = smul.u32 2, %s20
          %s187 = ssub.s32 256, 256
          %188 = vsyncadd %s181, %s187
          %s189 = smul.addr %s185, 128
          %s190 = scalar_lea.hbm %s0, %s189
          %s191 = sshll.u32 %s184, 4
          %s192 = int_to_ptr.vmem [resolvable:$true] %s191
          %197 = dma.hbm_to_vmem [thread:$0]  %s190, 256, %s192, %s181, 128, 128, 8
        $region24: #{tpu_custom_call.1} parent=19 // pred_fallthru
          _
        // Predicated region
        $region25: #{tpu_custom_call.1} parent=19 // pred_check
          %p198 = pneg %p66
        $region26: #{tpu_custom_call.1} parent=19 // pred_check_branch
          %200 = sbr.rel (%p198) target = $region28
        $region27: #{tpu_custom_call.1} parent=19 // pred_region
          %s201 = sand.u32 %s20, 1
          %s202 = scalar_lea.sflag [#allocation6], %s201
          %s203 = sand.u32 %s56, 1
          %s204 = smul.addr %s203, 16
          %s205 = scalar_lea.vmem [#allocation5], %s204
          %s206 = smul.u32 2, %s20
          %s208 = ssub.s32 256, 256
          %209 = vsyncadd %s202, %s208
          %s210 = smul.addr %s206, 128
          %s211 = scalar_lea.hbm %s1, %s210
          %s212 = sshll.u32 %s205, 4
          %s213 = int_to_ptr.vmem [resolvable:$true] %s212
          %218 = dma.hbm_to_vmem [thread:$0]  %s211, 256, %s213, %s202, 128, 128, 8
        $region28: #{tpu_custom_call.1} parent=19 // pred_fallthru
          _
        // Predicated region
        $region29: #{tpu_custom_call.1} parent=19 // pred_check
          %p219 = pneg %p92
        $region30: #{tpu_custom_call.1} parent=19 // pred_check_branch
          %221 = sbr.rel (%p219) target = $region32
        $region31: #{tpu_custom_call.1} parent=19 // pred_region
          %s222 = sand.u32 %s20, 1
          %s223 = scalar_lea.sflag [#allocation6], %s222
          %s224 = sand.u32 %s82, 1
          %s225 = smul.addr %s224, 16
          %s226 = scalar_lea.vmem [#allocation7], %s225
          %s227 = smul.u32 2, %s20
          %s229 = ssub.s32 256, 256
          %230 = vsyncadd %s223, %s229
          %s231 = smul.addr %s227, 128
          %s232 = scalar_lea.hbm %s2, %s231
          %s233 = sshll.u32 %s226, 4
          %s234 = int_to_ptr.vmem [resolvable:$true] %s233
          %239 = dma.hbm_to_vmem [thread:$0]  %s232, 256, %s234, %s223, 128, 128, 8
        $region32: #{tpu_custom_call.1} parent=19 // pred_fallthru
          _
      $region20: #{tpu_custom_call.1} parent=5 // pred_fallthru
        _
      %p240 = scmp.le.s32.totalorder 1, %s20
      %p241 = scmp.lt.s32.totalorder %s20, 5
      %p242 = pnand %p240, %p241
      %p243 = pneg %p242
      // Predicated region
      $region33: #{tpu_custom_call.1} parent=5 // pred_check
        _
      $region34: #{tpu_custom_call.1} parent=5 // pred_check_branch
        %245 = sbr.rel (%p242) target = $region36
      $region35: #{tpu_custom_call.1} parent=5 // pred_region
        %s246 = ssub.s32 %s20, 1
        %s247 = sand.u32 %s33, 1
        %s248 = scalar_lea.sflag [#allocation3], %s247
        %s249 = sand.u32 %s33, 1
        %s250 = smul.addr %s249, 16
        %s251 = scalar_lea.vmem [#allocation2], %s250
        // Predicated region
        $region37: #{tpu_custom_call.1} parent=35 // pred_check
          %p252 = pneg %p46
        $region38: #{tpu_custom_call.1} parent=35 // pred_check_branch
          %254 = sbr.rel (%p252) target = $region40
        $region39: #{tpu_custom_call.1} parent=35 // pred_region
          %255 = dma.done %s248, 256
        $region40: #{tpu_custom_call.1} parent=35 // pred_fallthru
          _
        %s256 = sand.u32 %s25, 1
        %s257 = scalar_lea.sflag [#allocation6], %s256
        %s258 = sand.u32 %s59, 1
        %s259 = smul.addr %s258, 16
        %s260 = scalar_lea.vmem [#allocation5], %s259
        // Predicated region
        $region41: #{tpu_custom_call.1} parent=35 // pred_check
          %p261 = pneg %p72
        $region42: #{tpu_custom_call.1} parent=35 // pred_check_branch
          %263 = sbr.rel (%p261) target = $region44
        $region43: #{tpu_custom_call.1} parent=35 // pred_region
          %264 = dma.done %s257, 256
        $region44: #{tpu_custom_call.1} parent=35 // pred_fallthru
          _
        %s265 = sand.u32 %s25, 1
        %s266 = scalar_lea.sflag [#allocation6], %s265
        %s267 = sand.u32 %s85, 1
        %s268 = smul.addr %s267, 16
        %s269 = scalar_lea.vmem [#allocation7], %s268
        // Predicated region
        $region45: #{tpu_custom_call.1} parent=35 // pred_check
          %p270 = pneg %p98
        $region46: #{tpu_custom_call.1} parent=35 // pred_check_branch
          %272 = sbr.rel (%p270) target = $region48
        $region47: #{tpu_custom_call.1} parent=35 // pred_region
          %273 = dma.done %s266, 256
        $region48: #{tpu_custom_call.1} parent=35 // pred_fallthru
          _
        // Predicated region
        $region49: #{tpu_custom_call.1} parent=35 // pred_check
          %p274 = pneg %p119
        $region50: #{tpu_custom_call.1} parent=35 // pred_check_branch
          %276 = sbr.rel (%p274) target = $region52
        $region51: #{tpu_custom_call.1} parent=35 // pred_region
          %277 = dma.done [#allocation9], 2048
        $region52: #{tpu_custom_call.1} parent=35 // pred_fallthru
          _
        %s278 = sand.u32 %s33, 1
        %s279 = scalar_lea.sflag [#allocation3], %s278
        %s280 = sand.u32 %s33, 1
        %s281 = smul.addr %s280, 16
        %s282 = scalar_lea.vmem [#allocation2], %s281
        %p283 = pneg %p46
        %p284 = pneg %p43
        %s285 = sand.u32 %s25, 1
        %s286 = scalar_lea.sflag [#allocation6], %s285
        %s287 = sand.u32 %s59, 1
        %s288 = smul.addr %s287, 16
        %s289 = scalar_lea.vmem [#allocation5], %s288
        %p290 = pneg %p72
        %p291 = pneg %p69
        %s292 = sand.u32 %s25, 1
        %s293 = scalar_lea.sflag [#allocation6], %s292
        %s294 = sand.u32 %s85, 1
        %s295 = smul.addr %s294, 16
        %s296 = scalar_lea.vmem [#allocation7], %s295
        %p297 = pneg %p98
        %p298 = pneg %p95
        %p299 = pneg %p119
        %p300 = pneg %p116
        %p301 = pneg %p145
        %p302 = pneg %p142
        %s303 = sand.u32 %s132, 1
        %s304 = scalar_lea.sflag [#allocation4], %s303
        %s305 = sand.u32 %s132, 1
        %s306 = smul.addr %s305, 8
        %s307 = scalar_lea.vmem [#allocation10], %s306
        %s308 = smul.u32 2, %s25
        %s309 = smul.u32 2, %s25
        %s310 = smul.u32 2, %s25
        %v311 = vld [vmem:[%s251] sm:$0xff]
        %v312 = vld [vmem:[%s251 + $0x8] sm:$0xff]
        %v313 = vld [vmem:[%s260] sm:$0xff]
        %v314 = vld [vmem:[%s260 + $0x8] sm:$0xff]
        %v315 = vld [vmem:[%s269] sm:$0xff]
        %v316 = vld [vmem:[%s269 + $0x8] sm:$0xff]
        %v317 = vsub.f32 %v315, %v313
        %v318 = vsub.f32 %v316, %v314
        %v319 = vsub.f32 %v311, %v313
        %v320 = vsub.f32 %v312, %v314
        %v321 = vsub.f32 %v311, %v315
        %v322 = vsub.f32 %v312, %v316
        %v323 = vadd.f32 %v319, %v321
        %v324 = vadd.f32 %v320, %v322
        %v325 = vmul.f32 %v317, %v323
        %v326 = vmul.f32 %v318, %v324
        %v327 = vld [vmem:[#allocation8] sm:$0xff]
        %v328 = vld [vmem:[#allocation8 + $0x8] sm:$0xff]
        %v329 = vld [vmem:[#allocation8 + $0x10] sm:$0xff]
        %v330 = vld [vmem:[#allocation8 + $0x18] sm:$0xff]
        %v331 = vld [vmem:[#allocation8 + $0x20] sm:$0xff]
        %v332 = vld [vmem:[#allocation8 + $0x28] sm:$0xff]
        %v333 = vld [vmem:[#allocation8 + $0x30] sm:$0xff]
        %v334 = vld [vmem:[#allocation8 + $0x38] sm:$0xff]
        %v335 = vld [vmem:[#allocation8 + $0x40] sm:$0xff]
        %v336 = vld [vmem:[#allocation8 + $0x48] sm:$0xff]
        %v337 = vld [vmem:[#allocation8 + $0x50] sm:$0xff]
        %v338 = vld [vmem:[#allocation8 + $0x58] sm:$0xff]
        %v339 = vld [vmem:[#allocation8 + $0x60] sm:$0xff]
        %v340 = vld [vmem:[#allocation8 + $0x68] sm:$0xff]
        %v341 = vld [vmem:[#allocation8 + $0x70] sm:$0xff]
        %v342 = vld [vmem:[#allocation8 + $0x78] sm:$0xff]
        %v343 = vlaneseq
        %v344 = vand.u32 %v343, 127
        %vm345 = vcmp.lt.s32.totalorder %v344, 0
        %v346 = vsub.s32 0, %v344
        %v347 = vsel %vm345, %v346, %v344
        %v348 = vshrl.u32 %v347, 5
        %v349 = vand.u32 %v347, 31
        %v350 = vsub.s32 0, %v349
        %v351 = vsel %vm345, %v350, %v349
        %vm352 = vcmp.ne.s32.totalorder %v351, 0
        %vm353 = vcmp.lt.s32.totalorder %v351, 0
        %vm354 = vmand %vm353, %vm352
        %v355 = vadd.s32 %v351, 32
        %v356 = vsel %vm354, %v355, %v351
        %vm357 = vcmp.eq.s32.totalorder %v356, 0
        %v358 = vsel %vm357, 0.875, -1e+30
        %359 = vmatprep.subr.mxu0 0.0
        %360 = vmatpush1.msra.mxu0 %v327
        %361 = vmatprep.subr.mxu0 0.0
        %362 = vmatpush1.msra.mxu0 %v328
        %363 = vmatprep.subr.mxu0 0.0
        %364 = vmatpush1.msra.mxu0 %v329
        %365 = vmatprep.subr.mxu0 0.0
        %366 = vmatpush1.msra.mxu0 %v330
        %367 = vmatprep.subr.mxu0 0.0
        %368 = vmatpush1.msra.mxu0 %v331
        %369 = vmatprep.subr.mxu0 0.0
        %370 = vmatpush1.msra.mxu0 %v332
        %371 = vmatprep.subr.mxu0 0.0
        %372 = vmatpush1.msra.mxu0 %v333
        %373 = vmatprep.subr.mxu0 0.0
        %374 = vmatpush1.msra.mxu0 %v334
        %375 = vmatprep.subr.mxu0 0.0
        %376 = vmatpush1.msra.mxu0 %v335
        %377 = vmatprep.subr.mxu0 0.0
        %378 = vmatpush1.msra.mxu0 %v336
        %379 = vmatprep.subr.mxu0 0.0
        %380 = vmatpush1.msra.mxu0 %v337
        %381 = vmatprep.subr.mxu0 0.0
        %382 = vmatpush1.msra.mxu0 %v338
        %383 = vmatprep.subr.mxu0 0.0
        %384 = vmatpush1.msra.mxu0 %v339
        %385 = vmatprep.subr.mxu0 0.0
        %386 = vmatpush1.msra.mxu0 %v340
        %387 = vmatprep.subr.mxu0 0.0
        %388 = vmatpush1.msra.mxu0 %v341
        %389 = vmatprep.subr.mxu0 0.0
        %390 = vmatpush1.msra.mxu0 %v342
        %391 = vmatprep.subr.mxu0 0.0
        %392 = vmatpush1.msra.mxu0 0.0
        %393 = vmatprep.subr.mxu0 0.0
        %394 = vmatpush1.msra.mxu0 0.0
        %395 = vmatprep.subr.mxu0 0.0
        %396 = vmatpush1.msra.mxu0 0.0
        %397 = vmatprep.subr.mxu0 0.0
        %398 = vmatpush1.msra.mxu0 0.0
        %399 = vmatprep.subr.mxu0 0.0
        %400 = vmatpush1.msra.mxu0 0.0
        %401 = vmatprep.subr.mxu0 0.0
        %402 = vmatpush1.msra.mxu0 0.0
        %403 = vmatprep.subr.mxu0 0.0
        %404 = vmatpush1.msra.mxu0 0.0
        %405 = vmatprep.subr.mxu0 0.0
        %406 = vmatpush1.msra.mxu0 0.0
        %407 = vmatprep.subr.mxu0 0.0
        %408 = vmatpush1.msra.mxu0 0.0
        %409 = vmatprep.subr.mxu0 0.0
        %410 = vmatpush1.msra.mxu0 0.0
        %411 = vmatprep.subr.mxu0 0.0
        %412 = vmatpush1.msra.mxu0 0.0
        %413 = vmatprep.subr.mxu0 0.0
        %414 = vmatpush1.msra.mxu0 0.0
        %415 = vmatprep.subr.mxu0 0.0
        %416 = vmatpush1.msra.mxu0 0.0
        %417 = vmatprep.subr.mxu0 0.0
        %418 = vmatpush1.msra.mxu0 0.0
        %419 = vmatprep.subr.mxu0 0.0
        %420 = vmatpush1.msra.mxu0 0.0
        %421 = vmatprep.subr.mxu0 0.0
        %422 = vmatpush1.msra.mxu0 0.0
        %423 = vmatprep.mubr.f32.mxu0 0.0
        %424 = vmatmul.mubr.f32.gmra.mrb[0].mxu0 %v325
        %v425 = vpop.f32.mrb[0].mxu0
        %v426 = vadd.f32 %v358, %v425
        %v427 = vpop.f32.mrb[0].mxu0
        %428 = vmatprep.mubr.f32.mxu0 0.0
        %429 = vmatmul.mubr.f32.gmra.mrb[0].mxu0 %v326
        %v430 = vpop.f32.mrb[0].mxu0
        %v431 = vadd.f32 %v358, %v430
        %v432 = vpop.f32.mrb[0].mxu0
        %433 = vdwg.mxu0
        %v434 = vmax.f32 %v426, 0.0
        %v435 = vmax.f32 %v431, 0.0
        %v436 = vadd.f32 %v434, %v435
        %437 = vst [vmem:[%s307] sm:$0xff] %v436
        %s438 = sand.u32 %s132, 1
        %s439 = scalar_lea.sflag [#allocation4], %s438
        %s440 = sand.u32 %s132, 1
        %s441 = smul.addr %s440, 8
        %s442 = scalar_lea.vmem [#allocation10], %s441
        // Predicated region
        $region53: #{tpu_custom_call.1} parent=35 // pred_check
          %p443 = pneg %p142
        $region54: #{tpu_custom_call.1} parent=35 // pred_check_branch
          %445 = sbr.rel (%p443) target = $region56
        $region55: #{tpu_custom_call.1} parent=35 // pred_region
          %s447 = ssub.s32 128, 128
          %448 = vsyncadd %s439, %s447
          %s449 = smul.addr %s25, 128
          %s450 = scalar_lea.hbm %s4, %s449
          %s452 = sshll.u32 %s442, 4
          %s453 = int_to_ptr.vmem [resolvable:$true] %s452
          %455 = dma.vmem_to_hbm [thread:$0]  %s453, 128, %s450, %s439
        $region56: #{tpu_custom_call.1} parent=35 // pred_fallthru
          _
      $region36: #{tpu_custom_call.1} parent=5 // pred_fallthru
        _
      %p456 = scmp.le.s32.totalorder 2, %s20
      // Predicated region
      $region57: #{tpu_custom_call.1} parent=5 // pred_check
        %p457 = pneg %p456
      $region58: #{tpu_custom_call.1} parent=5 // pred_check_branch
        %459 = sbr.rel (%p457) target = $region60
      $region59: #{tpu_custom_call.1} parent=5 // pred_region
        %s460 = ssub.s32 %s20, 2
        // Predicated region
        $region61: #{tpu_custom_call.1} parent=59 // pred_check
          %p461 = pneg %p148
        $region62: #{tpu_custom_call.1} parent=59 // pred_check_branch
          %463 = sbr.rel (%p461) target = $region64
        $region63: #{tpu_custom_call.1} parent=59 // pred_region
          %s464 = sand.u32 %s133, 1
          %s465 = scalar_lea.sflag [#allocation4], %s464
          %s466 = sand.u32 %s133, 1
          %s467 = smul.addr %s466, 8
          %s468 = scalar_lea.vmem [#allocation10], %s467
          %469 = dma.done %s465, 128
        $region64: #{tpu_custom_call.1} parent=59 // pred_fallthru
          _
      $region60: #{tpu_custom_call.1} parent=5 // pred_fallthru
        _
    $region6: #{tpu_custom_call.1} parent=1 // loop_footer
      %s24 = sadd.s32 1, %s20
    $region7: #{tpu_custom_call.1} parent=1 // loop_footer_branch
      %19 = sbr.rel target = $region3
    $region8: #{tpu_custom_call.1} parent=1 // loop_exit
      _
    %470 = vsyncpa [#allocation3], 1
    %s471 = scalar_lea.sflag [#allocation3], 1
    %472 = vsyncpa %s471, 1
    %473 = vsyncpa [#allocation6], 1
    %s474 = scalar_lea.sflag [#allocation6], 1
    %475 = vsyncpa %s474, 1
    %476 = vsyncpa [#allocation9], 1
    %477 = vsyncpa [#allocation4], 1
    %s478 = scalar_lea.sflag [#allocation4], 1
    %479 = vsyncpa %s478, 1

</llo_original>
